<compile_context>
chip_gen: v5e
topology: v5e:2x2
jax: 0.10.0
libtpu: 0.0.40
codegen_flags: <defaults>
</compile_context>

<pallas_src>
import functools

import jax
import jax.numpy as jnp
from jax.experimental import pallas as pl
from jax.experimental.pallas import tpu as pltpu

_LANE = 128


# ---------------- fused path: pool + MLP + scale in one body ----------------
def _ca_fused_kernel(x_ref, w1_ref, w2_ref, y_ref):
    x = x_ref[0]                                                  # (C, HW), native dtype
    c, hw = x.shape
    avg = jnp.sum(x, axis=1, keepdims=True, dtype=jnp.float32) * (1.0 / hw)  # (C,1)
    mx = jnp.max(x, axis=1, keepdims=True).astype(jnp.float32)               # (C,1)
    # Stack avg/max as two columns -> one MLP evaluation instead of two.
    col = jax.lax.broadcasted_iota(jnp.int32, (c, 2), 1)
    pooled = jnp.where(col == 0, avg, mx)                         # (C, 2) f32
    h = jnp.maximum(
        jnp.dot(w1_ref[...], pooled, preferred_element_type=jnp.float32), 0.0)  # fc1+ReLU
    o = jnp.dot(w2_ref[...], h, preferred_element_type=jnp.float32)             # fc2
    ca = jax.nn.sigmoid(jnp.sum(o, axis=1, keepdims=True))        # (C,1) sigmoid(avg+max)
    y_ref[0] = (x * ca.astype(x.dtype)).astype(y_ref.dtype)       # lane-dense store


# ---------------- tiled path, pass 1: pooling reduce + MLP -> ca ----------------
def _ca_pool_kernel(x_ref, w1_ref, w2_ref, ca_ref, sum_acc, max_acc, *,
                    inv_hw, hw, tile_hw, mask_tail):
    t = pl.program_id(1)
    x = x_ref[0]                                                  # (C, TILE), native dtype
    c = x.shape[0]

    @pl.when(t == 0)
    def _():
        sum_acc[...] = jnp.zeros_like(sum_acc)
        max_acc[...] = jnp.full_like(max_acc, -jnp.inf)

    if mask_tail:
        # Partial final tile: mask out-of-range lanes (their contents are
        # undefined padding) before reducing.
        lane = t * tile_hw + jax.lax.broadcasted_iota(jnp.int32, x.shape, 1)
        valid = lane < hw
        x_sum = jnp.where(valid, x, jnp.zeros((), x.dtype))
        x_max = jnp.where(valid, x, jnp.array(-jnp.inf, x.dtype))
    else:
        x_sum = x
        x_max = x

    sum_acc[...] += jnp.sum(x_sum, axis=1, keepdims=True, dtype=jnp.float32)
    max_acc[...] = jnp.maximum(
        max_acc[...], jnp.max(x_max, axis=1, keepdims=True).astype(jnp.float32))

    @pl.when(t == pl.num_programs(1) - 1)
    def _():
        col = jax.lax.broadcasted_iota(jnp.int32, (c, 2), 1)
        pooled = jnp.where(col == 0, sum_acc[...] * inv_hw, max_acc[...])   # (C, 2)
        h = jnp.maximum(
            jnp.dot(w1_ref[...], pooled, preferred_element_type=jnp.float32), 0.0)
        o = jnp.dot(w2_ref[...], h, preferred_element_type=jnp.float32)
        ca_ref[0] = jax.nn.sigmoid(jnp.sum(o, axis=1, keepdims=True)).astype(ca_ref.dtype)


# ---------------- tiled path, pass 2: apply channel attention ----------------
def _ca_scale_kernel(x_ref, ca_ref, y_ref):
    ca = ca_ref[0].astype(y_ref.dtype)                            # (C, 1)
    y_ref[0] = (x_ref[0] * ca).astype(y_ref.dtype)                # lane-dense store


# ---------------- generation-aware VMEM budget & tile sizing ----------------
def _round_up(v, m):
    return ((v + m - 1) // m) * m


def _vmem_limit_bytes():
    # v7x: 64 MiB physical -> ~56 MiB scoped; v5e/v6e: 128 MiB -> ~110 MiB.
    try:
        phys = int(pltpu.get_tpu_info().vmem_capacity_bytes)
    except Exception:
        phys = 64 << 20   # conservative fallback (smallest-VMEM generation)
    return max(32 << 20, min(phys - (8 << 20), 110 << 20))


def _pick_tile_lanes(hw, c, itemsize, vmem_bytes_per_lane, vmem_limit, max_steps=None):
    """Largest multiple-of-128 lane tile whose working set fits ~70% of VMEM."""
    budget = int(0.7 * vmem_limit)
    tile = (budget // max(vmem_bytes_per_lane, 1) // _LANE) * _LANE
    cap = _round_up(hw, _LANE)
    if max_steps is not None:
        # Split into >= max_steps pipeline steps, but never below a >=512-lane /
        # >=1 MiB block floor (per-grid-step overhead ~0.35us must stay hidden).
        step_cap = _round_up(-(-hw // max_steps), _LANE)
        floor = _round_up(max(512, -(-(1 << 20) // (c * itemsize))), _LANE)
        cap = min(cap, max(step_cap, floor))
    return max(_LANE, min(tile, cap))


# ---------------- wrapper ----------------
def channel_attention_pallas(x, fc1_w, fc2_w, *, force_tile_hw=None):
    n, c, hgt, wid = x.shape
    hw = hgt * wid
    cr = fc1_w.shape[0]
    dt = x.dtype
    isz = jnp.dtype(dt).itemsize

    # NCHW -> (N, C, H*W): metadata-only reshape, native dtype kept in HBM.
    x2 = x.reshape(n, c, hw)
    w1 = fc1_w.reshape(cr, c).astype(jnp.float32)   # fc1.weight (Cr,C,1,1) -> (Cr,C)
    w2 = fc2_w.reshape(c, cr).astype(jnp.float32)   # fc2.weight (C,Cr,1,1) -> (C,Cr)

    vmem_limit = _vmem_limit_bytes()

    def cparams(*sem):
        return pltpu.CompilerParams(dimension_semantics=sem,
                                    vmem_limit_bytes=vmem_limit)

    slab_bytes = c * hw * isz
    weight_bytes = 2 * (cr * c * 4)
    f32_temp = c * hw * 4 if dt != jnp.float32 else 0   # f32 reduce temp for low-precision x
    # Fused working set: 2x input + 2x output double buffers (+ f32 temp + weights).
    fused_fits = (4 * slab_bytes + f32_temp + 2 * weight_bytes) <= int(0.8 * vmem_limit)
    # With N==1 the fused path has a single grid step: no prefetch overlap and one
    # TensorCore on v7x.  Prefer the tiled path for large lone images.
    use_fused = fused_fits and not (n < 2 and slab_bytes > (4 << 20))
    if force_tile_hw is not None:
        use_fused = force_tile_hw >= hw

    if use_fused:
        y2 = pl.pallas_call(
            _ca_fused_kernel,
            out_shape=jax.ShapeDtypeStruct((n, c, hw), dt),
            grid=(n,),
            in_specs=[
                pl.BlockSpec((1, c, hw), lambda b: (b, 0, 0)),
                pl.BlockSpec((cr, c), lambda b: (0, 0)),
                pl.BlockSpec((c, cr), lambda b: (0, 0)),
            ],
            out_specs=pl.BlockSpec((1, c, hw), lambda b: (b, 0, 0)),
            compiler_params=cparams("parallel"),
        )(x2, w1, w2)
        return y2.reshape(n, c, hgt, wid)

    # --- tiled two-pass path ---
    max_steps = 8 if n < 2 else None     # give the pipeline / megacore >= ~8 steps
    if force_tile_hw is not None:
        tile1 = tile2 = force_tile_hw
    else:
        f32_lane = c * 4 if dt != jnp.float32 else 0
        tile1 = _pick_tile_lanes(hw, c, isz, 2 * c * isz + f32_lane, vmem_limit, max_steps)
        tile2 = _pick_tile_lanes(hw, c, isz, 4 * c * isz, vmem_limit, max_steps)

    num_t1 = -(-hw // tile1)
    num_t2 = -(-hw // tile2)

    # Pass 1: reduce HW tiles -> channel attention vector (N, C, 1), f32.
    ca = pl.pallas_call(
        functools.partial(_ca_pool_kernel, inv_hw=1.0 / hw, hw=hw,
                          tile_hw=tile1, mask_tail=(hw % tile1 != 0)),
        out_shape=jax.ShapeDtypeStruct((n, c, 1), jnp.float32),
        grid=(n, num_t1),
        in_specs=[
            pl.BlockSpec((1, c, tile1), lambda b, t: (b, 0, t)),
            pl.BlockSpec((cr, c), lambda b, t: (0, 0)),
            pl.BlockSpec((c, cr), lambda b, t: (0, 0)),
        ],
        out_specs=pl.BlockSpec((1, c, 1), lambda b, t: (b, 0, 0)),
        scratch_shapes=[pltpu.VMEM((c, 1), jnp.float32),
                        pltpu.VMEM((c, 1), jnp.float32)],
        compiler_params=cparams("parallel", "arbitrary"),
    )(x2, w1, w2)

    # Pass 2: y = x * ca, tile by tile (both grid axes independent / megacore).
    # TODO(synk): sweep pipeline_mode=pl.Buffered(3) on the x/y specs here if a
    # profile shows exposed DMA issue latency between steps (VMEM permitting).
    y2 = pl.pallas_call(
        _ca_scale_kernel,
        out_shape=jax.ShapeDtypeStruct((n, c, hw), dt),
        grid=(n, num_t2),
        in_specs=[
            pl.BlockSpec((1, c, tile2), lambda b, t: (b, 0, t)),
            pl.BlockSpec((1, c, 1), lambda b, t: (b, 0, 0)),
        ],
        out_specs=pl.BlockSpec((1, c, tile2), lambda b, t: (b, 0, t)),
        compiler_params=cparams("parallel", "parallel"),
    )(x2, ca)
    return y2.reshape(n, c, hgt, wid)


# ---------------- pure-JAX reference (mirrors the PyTorch forward) ----------------
def channel_attention_reference(x, fc1_w, fc2_w):
    n, c, h, w = x.shape
    cr = fc1_w.shape[0]
    w1 = fc1_w.reshape(cr, c)
    w2 = fc2_w.reshape(c, cr)
    avg = jnp.mean(x, axis=(2, 3))   # (N, C)  AdaptiveAvgPool2d(1)
    mx = jnp.max(x, axis=(2, 3))     # (N, C)  AdaptiveMaxPool2d(1)

    def mlp(v):
        h_ = jnp.maximum(jnp.dot(v, w1.T), 0.0)
        return jnp.dot(h_, w2.T)

    ca = jax.nn.sigmoid(mlp(avg) + mlp(mx))   # (N, C)
    return x * ca[:, :, None, None]


if __name__ == "__main__":
    key = jax.random.PRNGKey(0)
    k1, k2, k3, k4 = jax.random.split(key, 4)

    N, C, H, W = 2, 16, 16, 16
    ratio = 8
    Cr = C // ratio   # 2
    x = jax.random.normal(k1, (N, C, H, W), jnp.float32)
    fc1_w = 0.3 * jax.random.normal(k2, (Cr, C, 1, 1), jnp.float32)
    fc2_w = 0.3 * jax.random.normal(k3, (C, Cr, 1, 1), jnp.float32)

    ref = jax.block_until_ready(channel_attention_reference(x, fc1_w, fc2_w))
    out_fused = jax.block_until_ready(channel_attention_pallas(x, fc1_w, fc2_w))
    out_tiled = jax.block_until_ready(
        channel_attention_pallas(x, fc1_w, fc2_w, force_tile_hw=128))

    # vs XLA reference: the tiny fc1/fc2 matmuls use default (not HIGHEST)
    # precision per perf guidance, so allow for bf16-pass rounding of the MLP.
    for name, out in (("fused", out_fused), ("tiled", out_tiled)):
        assert out.shape == (N, C, H, W), (name, out.shape)
        if not jnp.allclose(out, ref, atol=2e-2, rtol=2e-2):
            raise AssertionError("%s mismatch, max abs diff %e"
                                 % (name, float(jnp.max(jnp.abs(out - ref)))))
    # Both kernel paths share the same in-kernel math -> tight consistency.
    assert jnp.allclose(out_fused, out_tiled, atol=1e-4, rtol=1e-4)

    # Ragged H*W (144 lanes): fused full-dim block + tiled masked partial tile.
    Hr = Wr = 12
    xr = jax.random.normal(k4, (N, C, Hr, Wr), jnp.float32)
    ref_r = channel_attention_reference(xr, fc1_w, fc2_w)
    out_rf = jax.block_until_ready(channel_attention_pallas(xr, fc1_w, fc2_w))
    out_rt = jax.block_until_ready(
        channel_attention_pallas(xr, fc1_w, fc2_w, force_tile_hw=128))
    assert jnp.allclose(out_rf, ref_r, atol=2e-2, rtol=2e-2)
    assert jnp.allclose(out_rt, ref_r, atol=2e-2, rtol=2e-2)
    assert jnp.allclose(out_rf, out_rt, atol=1e-4, rtol=1e-4)

    # Native-dtype path: bf16 stays bf16 end-to-end in HBM.
    xb = x.astype(jnp.bfloat16)
    out_b = jax.block_until_ready(channel_attention_pallas(xb, fc1_w, fc2_w))
    assert out_b.dtype == jnp.bfloat16
    ref_b = channel_attention_reference(xb.astype(jnp.float32), fc1_w, fc2_w)
    assert jnp.allclose(out_b.astype(jnp.float32), ref_b, atol=6e-2, rtol=6e-2)

    print("KERNEL_OK")
</pallas_src>

<mosaic_0001>
module attributes {stable_mosaic.version = 11 : i64} {
  func.func @_ca_fused_kernel(%arg0: i32, %arg1: memref<1x16x256xf32, #tpu.memory_space<vmem>>, %arg2: memref<2x16xf32, #tpu.memory_space<vmem>>, %arg3: memref<16x2xf32, #tpu.memory_space<vmem>>, %arg4: memref<1x16x256xf32, #tpu.memory_space<vmem>>) attributes {dimension_semantics = [#tpu.dimension_semantics<parallel>], iteration_bounds = array<i64: 2>, scalar_prefetch = 0 : i64, scratch_operands = 0 : i64, tpu.core_type = #tpu.core_type<tc>, window_params = [{transform_indices = @transform_0, window_bounds = array<i64: 1, 16, 256>}, {pipeline_mode = #tpu.pipeline_mode<synchronous>, transform_indices = @transform_1, window_bounds = array<i64: 2, 16>}, {pipeline_mode = #tpu.pipeline_mode<synchronous>, transform_indices = @transform_2, window_bounds = array<i64: 16, 2>}, {transform_indices = @transform_3, window_bounds = array<i64: 1, 16, 256>}]} {
    %c0 = arith.constant 0 : index
    %c0_0 = arith.constant 0 : index
    %c0_1 = arith.constant 0 : index
    %0 = vector.load %arg1[%c0, %c0_0, %c0_1] : memref<1x16x256xf32, #tpu.memory_space<vmem>>, vector<1x16x256xf32>
    %1 = vector.shape_cast %0 : vector<1x16x256xf32> to vector<16x256xf32>
    %cst = arith.constant dense<0.000000e+00> : vector<16xf32>
    %2 = vector.multi_reduction <add>, %1, %cst [1] : vector<16x256xf32> to vector<16xf32>
    %3 = vector.shape_cast %2 : vector<16xf32> to vector<16x1xf32>
    %cst_2 = arith.constant 3.906250e-03 : f32
    %4 = vector.broadcast %cst_2 : f32 to vector<16x1xf32>
    %5 = arith.mulf %3, %4 : vector<16x1xf32>
    %cst_3 = arith.constant dense<0xFF800000> : vector<16xf32>
    %6 = vector.multi_reduction <maximumf>, %1, %cst_3 [1] : vector<16x256xf32> to vector<16xf32>
    %7 = vector.shape_cast %6 : vector<16xf32> to vector<16x1xf32>
    %8 = tpu.iota {dimensions = array<i32: 1>} : vector<16x2xi32>
    %c0_i32 = arith.constant 0 : i32
    %9 = vector.broadcast %c0_i32 : i32 to vector<16x2xi32>
    %10 = arith.cmpi eq, %8, %9 : vector<16x2xi32>
    %11 = vector.shape_cast %5 : vector<16x1xf32> to vector<16x1xf32>
    %12 = vector.broadcast %11 : vector<16x1xf32> to vector<16x2xf32>
    %13 = vector.shape_cast %7 : vector<16x1xf32> to vector<16x1xf32>
    %14 = vector.broadcast %13 : vector<16x1xf32> to vector<16x2xf32>
    %15 = arith.select %10, %12, %14 : vector<16x2xi1>, vector<16x2xf32>
    %c0_4 = arith.constant 0 : index
    %c0_5 = arith.constant 0 : index
    %16 = vector.load %arg2[%c0_4, %c0_5] : memref<2x16xf32, #tpu.memory_space<vmem>>, vector<2x16xf32>
    %cst_6 = arith.constant dense<0.000000e+00> : vector<2x2xf32>
    %17 = tpu.matmul %16, %15, %cst_6 {dimension_numbers = #tpu.dot_dimension_numbers<[1], [0], [0], [1], [0, 0, 1, 1], [], []>} : vector<2x16xf32>, vector<16x2xf32>, vector<2x2xf32> -> vector<2x2xf32>
    %cst_7 = arith.constant 0.000000e+00 : f32
    %18 = vector.broadcast %cst_7 : f32 to vector<2x2xf32>
    %19 = arith.maximumf %17, %18 : vector<2x2xf32>
    %c0_8 = arith.constant 0 : index
    %c0_9 = arith.constant 0 : index
    %20 = vector.load %arg3[%c0_8, %c0_9] : memref<16x2xf32, #tpu.memory_space<vmem>>, vector<16x2xf32>
    %cst_10 = arith.constant dense<0.000000e+00> : vector<16x2xf32>
    %21 = tpu.matmul %20, %19, %cst_10 {dimension_numbers = #tpu.dot_dimension_numbers<[1], [0], [0], [1], [0, 0, 1, 1], [], []>} : vector<16x2xf32>, vector<2x2xf32>, vector<16x2xf32> -> vector<16x2xf32>
    %cst_11 = arith.constant dense<0.000000e+00> : vector<16xf32>
    %22 = vector.multi_reduction <add>, %21, %cst_11 [1] : vector<16x2xf32> to vector<16xf32>
    %23 = vector.shape_cast %22 : vector<16xf32> to vector<16x1xf32>
    %24 = arith.negf %23 : vector<16x1xf32>
    %25 = math.exp %24 : vector<16x1xf32>
    %cst_12 = arith.constant 1.000000e+00 : f32
    %26 = vector.broadcast %cst_12 : f32 to vector<16x1xf32>
    %27 = arith.addf %26, %25 : vector<16x1xf32>
    %28 = arith.divf %26, %27 : vector<16x1xf32>
    %29 = vector.broadcast %28 : vector<16x1xf32> to vector<16x256xf32>
    %30 = arith.mulf %1, %29 : vector<16x256xf32>
    %c0_13 = arith.constant 0 : index
    %c0_14 = arith.constant 0 : index
    %c0_15 = arith.constant 0 : index
    %31 = vector.load %arg4[%c0_13, %c0_14, %c0_15] : memref<1x16x256xf32, #tpu.memory_space<vmem>>, vector<1x16x256xf32>
    %32 = vector.shape_cast %31 : vector<1x16x256xf32> to vector<16x256xf32>
    %33 = vector.shape_cast %30 : vector<16x256xf32> to vector<1x16x256xf32>
    tpu.vector_store %arg4[%c0_13, %c0_14, %c0_15], %33 {strides = array<i32>} : memref<1x16x256xf32, #tpu.memory_space<vmem>>, vector<1x16x256xf32>,
    return
  }
  func.func @transform_0(%arg0: i32) -> (i32, i32, i32) {
    %c0_i32 = arith.constant 0 : i32
    %c0_i32_0 = arith.constant 0 : i32
    %c0_i32_1 = arith.constant 0 : i32
    return %arg0, %c0_i32, %c0_i32_0 : i32, i32, i32
  }
  func.func @transform_1(%arg0: i32) -> (i32, i32) {
    %c0_i32 = arith.constant 0 : i32
    %c0_i32_0 = arith.constant 0 : i32
    %c0_i32_1 = arith.constant 0 : i32
    return %c0_i32, %c0_i32_0 : i32, i32
  }
  func.func @transform_2(%arg0: i32) -> (i32, i32) {
    %c0_i32 = arith.constant 0 : i32
    %c0_i32_0 = arith.constant 0 : i32
    %c0_i32_1 = arith.constant 0 : i32
    return %c0_i32, %c0_i32_0 : i32, i32
  }
  func.func @transform_3(%arg0: i32) -> (i32, i32, i32) {
    %c0_i32 = arith.constant 0 : i32
    %c0_i32_0 = arith.constant 0 : i32
    %c0_i32_1 = arith.constant 0 : i32
    return %arg0, %c0_i32, %c0_i32_0 : i32, i32, i32
  }
}

</mosaic_0001>

<llo_original>
// kernel: tpu_custom_call.1
$region0: #{tpu_custom_call.1}
  #allocation0 [shape = 'u32[]', space=smem, size = 0x4, offset = 0x4, fixed_abs, tag = 'smem constant byte address 0x4 - core index']
  #allocation1 [shape = 'u32[72,128]{1,0:T(1,128)}', space=vmem, size = 0x9000, scoped, tag = 'internal scratch']
  %s0 = inlined_call_operand.hbm [shape: f32[2,16,256], index: 0, kind: input, shape index: {}]
  %s1 = inlined_call_operand.vmem [shape: f32[2,16], index: 1, kind: input, shape index: {}]
  %s2 = inlined_call_operand.vmem [shape: f32[16,2], index: 2, kind: input, shape index: {}]
  %s3 = inlined_call_operand.hbm [shape: f32[2,16,256], index: 3, kind: output, shape index: {}]
  %s4 = sld [smem:[#allocation0]]
  $region49: #{tpu_custom_call.1} parent=0
    _
  %s6 = ssub.s32 1, %s4
  %s7 = scalar_select 0, %s6, %s4
  $region1: #{tpu_custom_call.1} parent=0
    #allocation2 [shape = 'u8[32768]{0}', space=vmem, size = 0x8000, scoped, tag = 'input window, operand 0']
    #allocation3 [shape = 's32[2]{0}', space=sflag, size = 0x8, scoped, tag = 'scoped memory for tpu_custom_call.1']
    #allocation4 [shape = 's32[2]{0}', space=sflag, size = 0x8, scoped, tag = 'scoped memory for tpu_custom_call.1']
    #allocation5 [shape = 'u8[32768]{0}', space=vmem, size = 0x8000, scoped, tag = 'output window, operand 0']
    %8 = vsyncpa [#allocation3], 0
    %s9 = scalar_lea.sflag [#allocation3], 1
    %10 = vsyncpa %s9, 0
    %11 = vsyncpa [#allocation4], 0
    %s12 = scalar_lea.sflag [#allocation4], 1
    %13 = vsyncpa %s12, 0
    loop: start=0, step=1, limit=4
    $region2: #{tpu_custom_call.1} parent=1 // loop_pre_header
      _
    $region3: #{tpu_custom_call.1} parent=1 // loop_header
      %s15 = sphi 0, %s19
      %p16 = scmp.ge.s32.totalorder %s15, 4
      %s25 = sphi 0, %s27
      %s28 = sphi 0, %s25
      %s29 = sphi 0, %s28
      %s45 = sphi 0, %s29
      %s49 = sphi 0, %s49
      %s51 = sphi 0, %s49
      %s52 = sphi 0, %s51
      %s66 = sphi 0, %s52
      %s70 = sphi 0, %s70
      %s72 = sphi 0, %s70
      %s73 = sphi 0, %s72
      %s87 = sphi 0, %s73
      %s93 = sphi 0, %s95
      %s96 = sphi 0, %s93
      %s97 = sphi 0, %s96
      %s113 = sphi 0, %s97
    $region4: #{tpu_custom_call.1} parent=1 // loop_header_branch
      %18 = sbr.rel (%p16) target = $region8
    $region5: #{tpu_custom_call.1} parent=1 // loop_body
      %s20 = ssub.s32 %s15, 1
      %s21 = ssub.s32 %s15, 2
      %s22 = sadd.s32 %s15, 1
      %s23 = ssub.s32 %s15, %s22
      %p24 = scmp.eq.s32.totalorder %s23, 0
      %s26 = sadd.s32 %s25, 1
      %s27 = scalar_select %p24, %s25, %s26
      %p30 = pneg %p24
      %p31 = scmp.eq.s32.totalorder %s15, 1
      %p32 = por %p30, %p31
      %p33 = scmp.ne.s32.totalorder %s25, %s28
      %p34 = scmp.eq.s32.totalorder %s15, 0
      %p35 = por %p33, %p34
      %p36 = scmp.ne.s32.totalorder %s25, %s28
      %p37 = scmp.eq.s32.totalorder %s20, 1
      %p38 = por %p36, %p37
      %p39 = scmp.ne.s32.totalorder %s28, %s29
      %p40 = scmp.eq.s32.totalorder %s20, 0
      %p41 = por %p39, %p40
      %p42 = scmp.ne.s32.totalorder %s28, %s29
      %p43 = scmp.eq.s32.totalorder %s21, 1
      %p44 = por %p42, %p43
      %p46 = scmp.ne.s32.totalorder %s29, %s45
      %p47 = scmp.eq.s32.totalorder %s21, 0
      %p48 = por %p46, %p47
      %s50 = sadd.s32 %s49, 1
      %p53 = scmp.eq.s32.totalorder %s15, 1
      %p54 = scmp.ne.s32.totalorder %s49, %s51
      %p55 = scmp.eq.s32.totalorder %s15, 0
      %p56 = por %p54, %p55
      %p57 = scmp.ne.s32.totalorder %s49, %s51
      %p58 = scmp.eq.s32.totalorder %s20, 1
      %p59 = por %p57, %p58
      %p60 = scmp.ne.s32.totalorder %s51, %s52
      %p61 = scmp.eq.s32.totalorder %s20, 0
      %p62 = por %p60, %p61
      %p63 = scmp.ne.s32.totalorder %s51, %s52
      %p64 = scmp.eq.s32.totalorder %s21, 1
      %p65 = por %p63, %p64
      %p67 = scmp.ne.s32.totalorder %s52, %s66
      %p68 = scmp.eq.s32.totalorder %s21, 0
      %p69 = por %p67, %p68
      %s71 = sadd.s32 %s70, 1
      %p74 = scmp.eq.s32.totalorder %s15, 1
      %p75 = scmp.ne.s32.totalorder %s70, %s72
      %p76 = scmp.eq.s32.totalorder %s15, 0
      %p77 = por %p75, %p76
      %p78 = scmp.ne.s32.totalorder %s70, %s72
      %p79 = scmp.eq.s32.totalorder %s20, 1
      %p80 = por %p78, %p79
      %p81 = scmp.ne.s32.totalorder %s72, %s73
      %p82 = scmp.eq.s32.totalorder %s20, 0
      %p83 = por %p81, %p82
      %p84 = scmp.ne.s32.totalorder %s72, %s73
      %p85 = scmp.eq.s32.totalorder %s21, 1
      %p86 = por %p84, %p85
      %p88 = scmp.ne.s32.totalorder %s73, %s87
      %p89 = scmp.eq.s32.totalorder %s21, 0
      %p90 = por %p88, %p89
      %s91 = ssub.s32 %s15, %s22
      %p92 = scmp.eq.s32.totalorder %s91, 0
      %s94 = sadd.s32 %s93, 1
      %s95 = scalar_select %p92, %s93, %s94
      %p98 = pneg %p92
      %p99 = scmp.eq.s32.totalorder %s15, 1
      %p100 = por %p98, %p99
      %p101 = scmp.ne.s32.totalorder %s93, %s96
      %p102 = scmp.eq.s32.totalorder %s15, 0
      %p103 = por %p101, %p102
      %p104 = scmp.ne.s32.totalorder %s93, %s96
      %p105 = scmp.eq.s32.totalorder %s20, 1
      %p106 = por %p104, %p105
      %p107 = scmp.ne.s32.totalorder %s96, %s97
      %p108 = scmp.eq.s32.totalorder %s20, 0
      %p109 = por %p107, %p108
      %p110 = scmp.ne.s32.totalorder %s96, %s97
      %p111 = scmp.eq.s32.totalorder %s21, 1
      %p112 = por %p110, %p111
      %p114 = scmp.ne.s32.totalorder %s97, %s113
      %p115 = scmp.eq.s32.totalorder %s21, 0
      %p116 = por %p114, %p115
      %p117 = scmp.le.s32.totalorder 1, %s15
      %p118 = scmp.lt.s32.totalorder %s15, 3
      %p119 = pnand %p117, %p118
      %p120 = pneg %p119
      // Predicated region
      $region9: #{tpu_custom_call.1} parent=5 // pred_check
        _
      $region10: #{tpu_custom_call.1} parent=5 // pred_check_branch
        %122 = sbr.rel (%p119) target = $region12
      $region11: #{tpu_custom_call.1} parent=5 // pred_region
        %s123 = ssub.s32 %s15, 1
        // Predicated region
        $region13: #{tpu_custom_call.1} parent=11 // pred_check
          %p124 = pneg %p62
        $region14: #{tpu_custom_call.1} parent=11 // pred_check_branch
          %126 = sbr.rel (%p124) target = $region16
        $region15: #{tpu_custom_call.1} parent=11 // pred_region
          _
        $region16: #{tpu_custom_call.1} parent=11 // pred_fallthru
          _
        // Predicated region
        $region17: #{tpu_custom_call.1} parent=11 // pred_check
          %p127 = pneg %p83
        $region18: #{tpu_custom_call.1} parent=11 // pred_check_branch
          %129 = sbr.rel (%p127) target = $region20
        $region19: #{tpu_custom_call.1} parent=11 // pred_region
          _
        $region20: #{tpu_custom_call.1} parent=11 // pred_fallthru
          _
      $region12: #{tpu_custom_call.1} parent=5 // pred_fallthru
        _
      %p130 = scmp.lt.s32.totalorder %s15, 2
      // Predicated region
      $region21: #{tpu_custom_call.1} parent=5 // pred_check
        %p131 = pneg %p130
      $region22: #{tpu_custom_call.1} parent=5 // pred_check_branch
        %133 = sbr.rel (%p131) target = $region24
      $region23: #{tpu_custom_call.1} parent=5 // pred_region
        // Predicated region
        $region25: #{tpu_custom_call.1} parent=23 // pred_check
          %p134 = pneg %p35
        $region26: #{tpu_custom_call.1} parent=23 // pred_check_branch
          %136 = sbr.rel (%p134) target = $region28
        $region27: #{tpu_custom_call.1} parent=23 // pred_region
          %s137 = sand.u32 %s25, 1
          %s138 = scalar_lea.sflag [#allocation3], %s137
          %s139 = sand.u32 %s25, 1
          %s140 = smul.addr %s139, 32
          %s141 = scalar_lea.vmem [#allocation2], %s140
          %143 = vsyncadd %s138, 0
          %s144 = smul.addr %s15, 4
          %s145 = smul.addr %s144, 8
          %s146 = scalar_lea.hbm %s0, %s145
          %s147 = sshll.u32 %s146, 4
          %s148 = int_to_ptr.hbm [resolvable:$true] %s147
          %s149 = sshll.u32 %s141, 4
          %s150 = int_to_ptr.vmem [resolvable:$true] %s149
          %155 = dma.hbm_to_vmem [thread:$0]  %s148, 512, %s150, %s138, 256, 256, 16
        $region28: #{tpu_custom_call.1} parent=23 // pred_fallthru
          _
      $region24: #{tpu_custom_call.1} parent=5 // pred_fallthru
        _
      %p156 = scmp.le.s32.totalorder 1, %s15
      %p157 = scmp.lt.s32.totalorder %s15, 3
      %p158 = pnand %p156, %p157
      %p159 = pneg %p158
      // Predicated region
      $region29: #{tpu_custom_call.1} parent=5 // pred_check
        _
      $region30: #{tpu_custom_call.1} parent=5 // pred_check_branch
        %161 = sbr.rel (%p158) target = $region32
      $region31: #{tpu_custom_call.1} parent=5 // pred_region
        %s162 = ssub.s32 %s15, 1
        %s163 = sand.u32 %s28, 1
        %s164 = scalar_lea.sflag [#allocation3], %s163
        %s165 = sand.u32 %s28, 1
        %s166 = smul.addr %s165, 32
        %s167 = scalar_lea.vmem [#allocation2], %s166
        // Predicated region
        $region33: #{tpu_custom_call.1} parent=31 // pred_check
          %p168 = pneg %p41
        $region34: #{tpu_custom_call.1} parent=31 // pred_check_branch
          %170 = sbr.rel (%p168) target = $region36
        $region35: #{tpu_custom_call.1} parent=31 // pred_region
          %172 = dma.done %s164, 512
        $region36: #{tpu_custom_call.1} parent=31 // pred_fallthru
          _
        %s173 = sand.u32 %s28, 1
        %s174 = scalar_lea.sflag [#allocation3], %s173
        %s175 = sand.u32 %s28, 1
        %s176 = smul.addr %s175, 32
        %s177 = scalar_lea.vmem [#allocation2], %s176
        %p178 = pneg %p41
        %p179 = pneg %p38
        %p180 = pneg %p62
        %p181 = pneg %p59
        %p182 = pneg %p83
        %p183 = pneg %p80
        %p184 = pneg %p109
        %p185 = pneg %p106
        %s186 = sand.u32 %s96, 1
        %s187 = scalar_lea.sflag [#allocation4], %s186
        %s188 = sand.u32 %s96, 1
        %s189 = smul.addr %s188, 32
        %s190 = scalar_lea.vmem [#allocation5], %s189
        %v191 = vld [vmem:[%s167] sm:$0xff]
        %v192 = vld [vmem:[%s167 + $0x8] sm:$0xff]
        %v193 = vld [vmem:[%s167 + $0x10] sm:$0xff]
        %v194 = vld [vmem:[%s167 + $0x18] sm:$0xff]
        %v195 = vadd.f32 %v191, %v192
        %196 = vadd.xlane.f32.xlu0 %v195
        %v197 = vpop.xlane.xlu0 %196
        %v198 = vadd.f32 %v193, %v194
        %199 = vadd.xlane.f32.xlu0 %v198
        %v200 = vpop.xlane.xlu0 %199
        %v201 = vmul.f32 %v197, 0.00390625
        %v202 = vmul.f32 %v200, 0.00390625
        %v203 = vmax.f32 %v191, %v192
        %204 = vmax.xlane.f32.xlu0 %v203
        %v205 = vpop.xlane.xlu0 %204
        %v206 = vmax.f32 %v193, %v194
        %207 = vmax.xlane.f32.xlu0 %v206
        %v208 = vpop.xlane.xlu0 %207
        %v209 = vlaneseq
        %v210 = vand.u32 %v209, 127
        %vm211 = vcmp.eq.s32.totalorder %v210, 0
        %v212 = vsel %vm211, %v201, %v205
        %v213 = vsel %vm211, %v202, %v208
        %v214 = vld [vmem:[%s1] sm:$0x3]
        %vm215 = vcmask 130048
        %v217 = vsel %vm215, %v214, 0
        %219 = vmatpush.msra.mxu0 0.0
        %220 = vmatpush.msra.mxu0 0.0
        %221 = vmatpush.msra.mxu0 0.0
        %222 = vmatpush.msra.mxu0 0.0
        %223 = vmatpush.msra.mxu0 0.0
        %224 = vmatpush.msra.mxu0 0.0
        %225 = vmatpush.msra.mxu0 0.0
        %226 = vmatpush.msra.mxu0 0.0
        %227 = vmatpush.msra.mxu0 0.0
        %228 = vmatpush.msra.mxu0 0.0
        %229 = vmatpush.msra.mxu0 0.0
        %230 = vmatpush.msra.mxu0 0.0
        %231 = vmatpush.msra.mxu0 0.0
        %232 = vmatpush.msra.mxu0 0.0
        %233 = vmatpush.msra.mxu0 %v213
        %234 = vmatpush.msra.mxu0 %v212
        %235 = vmatmul.f32.gmra.mxu0 %v217
        %v236 = vpop.f32.mrf.mxu0
        %v237 = vadd.f32 0.0, %v236
        %238 = vdwg.mxu0
        %v239 = vmax.f32 %v237, 0.0
        %v240 = vld [vmem:[%s2] sm:$0xff]
        %v241 = vld [vmem:[%s2 + $0x8] sm:$0xff]
        %vm242 = vcmask 15360
        %v244 = vsel %vm242, %v240, 0
        %v247 = vsel %vm242, %v241, 0
        %vm249 = vcmask 1041408
        %v251 = vsel %vm249, %v239, 0
        %253 = vmatpush.msra.mxu0 0.0
        %254 = vmatpush.msra.mxu0 0.0
        %255 = vmatpush.msra.mxu0 0.0
        %256 = vmatpush.msra.mxu0 0.0
        %257 = vmatpush.msra.mxu0 0.0
        %258 = vmatpush.msra.mxu0 0.0
        %259 = vmatpush.msra.mxu0 0.0
        %260 = vmatpush.msra.mxu0 0.0
        %261 = vmatpush.msra.mxu0 0.0
        %262 = vmatpush.msra.mxu0 0.0
        %263 = vmatpush.msra.mxu0 0.0
        %264 = vmatpush.msra.mxu0 0.0
        %265 = vmatpush.msra.mxu0 0.0
        %266 = vmatpush.msra.mxu0 0.0
        %267 = vmatpush.msra.mxu0 0.0
        %268 = vmatpush.msra.mxu0 %v251
        %269 = vmatmul.f32.gmra.mxu0 %v244
        %v270 = vpop.f32.mrf.mxu0
        %v271 = vadd.f32 0.0, %v270
        %272 = vmatmul.f32.gmra.mxu0 %v247
        %v273 = vpop.f32.mrf.mxu0
        %v274 = vadd.f32 0.0, %v273
        %275 = vdwg.mxu0
        %v276 = vsel %vm242, %v271, 0.0
        %277 = vadd.xlane.f32.xlu0 %v276
        %v278 = vpop.xlane.xlu0 %277
        %v279 = vsel %vm242, %v274, 0.0
        %280 = vadd.xlane.f32.xlu0 %v279
        %v281 = vpop.xlane.xlu0 %280
        %v282 = vxor.u32 %v278, 2147483648
        %v283 = vxor.u32 %v281, 2147483648
        %v284 = vmul.f32 %v282, 1.442695
        %v285 = vpow.pop %v284
        %v286 = vmul.f32 %v283, 1.442695
        %v287 = vpow.pop %v286
        %v288 = vadd.f32 %v285, 1.0
        %v289 = vadd.f32 %v287, 1.0
        %v290 = vrcp.pop %v288
        %v291 = vmul.f32 %v288, %v290
        %v292 = vsub.f32 1.0, %v291
        %v293 = vmul.f32 %v290, %v292
        %v294 = vadd.f32 %v290, %v293
        %vm295 = vweird.f32 %v288
        %vm296 = vweird.f32 %v290
        %vm297 = vmor %vm295, %vm296
        %v298 = vsel %vm297, %v290, %v294
        %v299 = vand.u32 2147483647, %v288
        %vm300 = vcmp.eq.f32.partialorder %v299, 8.507059e+37
        %v301 = vand.u32 %v288, 2147483648
        %v302 = vor.u32 1.1754944e-38, %v301
        %v303 = vsel %vm300, %v302, %v298
        %v304 = vmul.f32 1.0, %v303
        %v305 = vrcp.pop %v289
        %v306 = vmul.f32 %v289, %v305
        %v307 = vsub.f32 1.0, %v306
        %v308 = vmul.f32 %v305, %v307
        %v309 = vadd.f32 %v305, %v308
        %vm310 = vweird.f32 %v289
        %vm311 = vweird.f32 %v305
        %vm312 = vmor %vm310, %vm311
        %v313 = vsel %vm312, %v305, %v309
        %v314 = vand.u32 2147483647, %v289
        %vm315 = vcmp.eq.f32.partialorder %v314, 8.507059e+37
        %v316 = vand.u32 %v289, 2147483648
        %v317 = vor.u32 1.1754944e-38, %v316
        %v318 = vsel %vm315, %v317, %v313
        %v319 = vmul.f32 1.0, %v318
        %v320 = vmul.f32 %v191, %v304
        %v321 = vmul.f32 %v192, %v304
        %v322 = vmul.f32 %v193, %v319
        %v323 = vmul.f32 %v194, %v319
        %324 = vst [vmem:[%s190] sm:$0xff] %v320
        %325 = vst [vmem:[%s190 + $0x8] sm:$0xff] %v321
        %326 = vst [vmem:[%s190 + $0x10] sm:$0xff] %v322
        %327 = vst [vmem:[%s190 + $0x18] sm:$0xff] %v323
        %s328 = sand.u32 %s96, 1
        %s329 = scalar_lea.sflag [#allocation4], %s328
        %s330 = sand.u32 %s96, 1
        %s331 = smul.addr %s330, 32
        %s332 = scalar_lea.vmem [#allocation5], %s331
        // Predicated region
        $region37: #{tpu_custom_call.1} parent=31 // pred_check
          %p333 = pneg %p106
        $region38: #{tpu_custom_call.1} parent=31 // pred_check_branch
          %335 = sbr.rel (%p333) target = $region40
        $region39: #{tpu_custom_call.1} parent=31 // pred_region
          %337 = vsyncadd %s329, 0
          %s338 = smul.addr %s20, 4
          %s339 = smul.addr %s338, 8
          %s340 = scalar_lea.hbm %s3, %s339
          %s341 = sshll.u32 %s332, 4
          %s342 = int_to_ptr.vmem [resolvable:$true] %s341
          %s343 = sshll.u32 %s340, 4
          %s344 = int_to_ptr.hbm [resolvable:$true] %s343
          %349 = dma.vmem_to_hbm [thread:$0]  %s342, 512, %s344, %s329, 256, 256, 16
        $region40: #{tpu_custom_call.1} parent=31 // pred_fallthru
          _
      $region32: #{tpu_custom_call.1} parent=5 // pred_fallthru
        _
      %p350 = scmp.le.s32.totalorder 2, %s15
      // Predicated region
      $region41: #{tpu_custom_call.1} parent=5 // pred_check
        %p351 = pneg %p350
      $region42: #{tpu_custom_call.1} parent=5 // pred_check_branch
        %353 = sbr.rel (%p351) target = $region44
      $region43: #{tpu_custom_call.1} parent=5 // pred_region
        %s354 = ssub.s32 %s15, 2
        // Predicated region
        $region45: #{tpu_custom_call.1} parent=43 // pred_check
          %p355 = pneg %p112
        $region46: #{tpu_custom_call.1} parent=43 // pred_check_branch
          %357 = sbr.rel (%p355) target = $region48
        $region47: #{tpu_custom_call.1} parent=43 // pred_region
          %s358 = sand.u32 %s97, 1
          %s359 = scalar_lea.sflag [#allocation4], %s358
          %s360 = sand.u32 %s97, 1
          %s361 = smul.addr %s360, 32
          %s362 = scalar_lea.vmem [#allocation5], %s361
          %364 = dma.done %s359, 512
        $region48: #{tpu_custom_call.1} parent=43 // pred_fallthru
          _
      $region44: #{tpu_custom_call.1} parent=5 // pred_fallthru
        _
    $region6: #{tpu_custom_call.1} parent=1 // loop_footer
      %s19 = sadd.s32 1, %s15
    $region7: #{tpu_custom_call.1} parent=1 // loop_footer_branch
      %14 = sbr.rel target = $region3
    $region8: #{tpu_custom_call.1} parent=1 // loop_exit
      _
    %365 = vsyncpa [#allocation3], 1
    %s366 = scalar_lea.sflag [#allocation3], 1
    %367 = vsyncpa %s366, 1
    %368 = vsyncpa [#allocation4], 1
    %s369 = scalar_lea.sflag [#allocation4], 1
    %370 = vsyncpa %s369, 1

</llo_original>
